<compile_context>
chip_gen: v7x
topology: tpu7x:2x2x1
jax: 0.10.0
libtpu: 0.0.40
codegen_flags: <defaults>
</compile_context>

<pallas_src>
import jax
import jax.numpy as jnp
from jax.experimental import pallas as pl
from jax.experimental.pallas import tpu as pltpu

_LANE = 128


def _normalize_kernel(sb_ref, x_ref, o_ref):
    # sb_ref: (br, 2) f32 per-row [scale, bias]; x_ref/o_ref: (br, bl) tiles.
    # Single broadcasted FMA in f32 on the VPU; fully HBM-bandwidth bound.
    sb = sb_ref[...]
    scale = sb[:, 0:1]
    bias = sb[:, 1:2]
    x = x_ref[...].astype(jnp.float32)
    o_ref[...] = (x * scale + bias).astype(o_ref.dtype)


def _choose_blocks(R, L, itemsize, max_block_bytes):
    """Pick (br, bl) so each block is <= max_block_bytes and tile-aligned."""
    # dtype-aware sublane packing multiple: 8 (f32), 16 (bf16), 32 (int8/fp8).
    sub = max(8, (32 // (itemsize * 8)) * 8)

    # Lane block: full extent when even a minimum-height block fits the budget
    # (full-extent is valid for any L), otherwise a 128-multiple sized so a
    # sub-row-high block stays within budget.
    if L * sub * itemsize <= max_block_bytes:
        bl = L
    else:
        bl = max(_LANE, (max_block_bytes // (sub * itemsize) // _LANE) * _LANE)

    # Row block: as many sublane-aligned rows as fit the budget, or full R.
    rows_budget = max(1, max_block_bytes // (bl * itemsize))
    if rows_budget >= R:
        br = R
    else:
        br = max(sub, (rows_budget // sub) * sub)

    # Megacore (v7x): keep >=2 grid steps along a parallel axis for non-tiny
    # problems so both TensorCores share the streaming work.
    total_bytes = R * L * itemsize
    if total_bytes > (1 << 20) and pl.cdiv(R, br) * pl.cdiv(L, bl) < 2:
        if R >= 2 * sub:
            br = max(sub, ((R // 2) // sub) * sub)
        elif L >= 2 * _LANE:
            bl = max(_LANE, ((L // 2) // _LANE) * _LANE)
    return br, bl


def normalization_forward(x, mean, std, *,
                          max_block_bytes=2 * 1024 * 1024,
                          min_kernel_bytes=256 * 1024):
    """(x - mean[None,:,None,None]) / std[None,:,None,None], x in NCHW."""
    N, C, H, W = x.shape
    assert mean.shape == (C,) and std.shape == (C,)

    mean32 = mean.astype(jnp.float32)
    inv_std = 1.0 / std.astype(jnp.float32)
    # Torch's (x - mean)/std with f32 params promotes to >= f32.
    out_dtype = jnp.promote_types(x.dtype, jnp.float32)

    itemsize = jnp.dtype(x.dtype).itemsize
    if N * C * H * W * itemsize < min_kernel_bytes:
        # Tiny inputs: pallas_call fixed cost dominates; let XLA fuse the FMA.
        y = (x.astype(jnp.float32) - mean32.reshape(1, C, 1, 1)) \
            * inv_std.reshape(1, C, 1, 1)
        return y.astype(out_dtype)

    R, L = N * C, H * W
    x2 = x.reshape(R, L)  # lane-dense 2D view; no pad, no extra HBM pass

    # Per-row [scale, bias] so the kernel is a pure FMA: y = x*scale + bias.
    sb = jnp.stack([jnp.tile(inv_std, N), jnp.tile(-mean32 * inv_std, N)],
                   axis=-1)  # (R, 2) float32

    br, bl = _choose_blocks(R, L, itemsize, max_block_bytes)
    # Lane axis innermost so the (br, 2) scale/bias tile keeps the same block
    # index across the inner sweep (no redundant re-DMA).
    grid = (pl.cdiv(R, br), pl.cdiv(L, bl))

    out2 = pl.pallas_call(
        _normalize_kernel,
        out_shape=jax.ShapeDtypeStruct((R, L), out_dtype),
        grid_spec=pl.GridSpec(
            grid=grid,
            in_specs=[
                pl.BlockSpec((br, 2), lambda i, j: (i, 0)),    # [scale, bias]
                pl.BlockSpec((br, bl), lambda i, j: (i, j)),   # x tile
            ],
            out_specs=pl.BlockSpec((br, bl), lambda i, j: (i, j)),
        ),
        compiler_params=pltpu.CompilerParams(
            dimension_semantics=("parallel", "parallel"),
        ),
    )(sb, x2)

    return out2.reshape(N, C, H, W)


if __name__ == "__main__":
    key = jax.random.PRNGKey(0)

    # Module __init__ implies 3 channels (view((1, 3, 1, 1))).
    N, C, H, W = 2, 3, 16, 16
    x = jax.random.uniform(key, (N, C, H, W), dtype=jnp.float32)

    # Deterministic parameters (CIFAR-style normalization constants).
    mean = jnp.array([0.4914, 0.4822, 0.4465], dtype=jnp.float32)
    std = jnp.array([0.2023, 0.1994, 0.2010], dtype=jnp.float32)

    # Force the kernel path (min_kernel_bytes=0) so this test exercises Pallas.
    out = jax.block_until_ready(
        normalization_forward(x, mean, std, min_kernel_bytes=0))
    ref = (x - mean.reshape(1, C, 1, 1)) / std.reshape(1, C, 1, 1)
    assert out.shape == ref.shape and out.dtype == ref.dtype
    assert jnp.allclose(out, ref, atol=1e-5, rtol=1e-5)

    # Non-128-aligned spatial extent: exercises the pad-free full-extent path.
    xb = jax.random.uniform(jax.random.PRNGKey(1), (2, 3, 9, 15),
                            dtype=jnp.float32)
    outb = jax.block_until_ready(
        normalization_forward(xb, mean, std, min_kernel_bytes=0))
    refb = (xb - mean.reshape(1, 3, 1, 1)) / std.reshape(1, 3, 1, 1)
    assert jnp.allclose(outb, refb, atol=1e-5, rtol=1e-5)

    # Small block budget forces a multi-step grid with a masked partial
    # boundary block along the lane axis (no padding, writes are masked).
    xc = jax.random.uniform(jax.random.PRNGKey(2), (2, 3, 16, 40),
                            dtype=jnp.float32)
    outc = jax.block_until_ready(
        normalization_forward(xc, mean, std, min_kernel_bytes=0,
                              max_block_bytes=8 * 1024))
    refc = (xc - mean.reshape(1, 3, 1, 1)) / std.reshape(1, 3, 1, 1)
    assert jnp.allclose(outc, refc, atol=1e-5, rtol=1e-5)

    print("KERNEL_OK")
</pallas_src>

<mosaic_0001>
module attributes {stable_mosaic.version = 11 : i64} {
  func.func @_normalize_kernel(%arg0: i32, %arg1: i32, %arg2: memref<6x2xf32, #tpu.memory_space<vmem>>, %arg3: memref<6x256xf32, #tpu.memory_space<vmem>>, %arg4: memref<6x256xf32, #tpu.memory_space<vmem>>) attributes {dimension_semantics = [#tpu.dimension_semantics<parallel>, #tpu.dimension_semantics<parallel>], iteration_bounds = array<i64: 1, 1>, scalar_prefetch = 0 : i64, scratch_operands = 0 : i64, tpu.core_type = #tpu.core_type<tc>, window_params = [{transform_indices = @transform_0, window_bounds = array<i64: 6, 2>}, {transform_indices = @transform_1, window_bounds = array<i64: 6, 256>}, {transform_indices = @transform_2, window_bounds = array<i64: 6, 256>}]} {
    %c0 = arith.constant 0 : index
    %c0_0 = arith.constant 0 : index
    %0 = vector.load %arg2[%c0, %c0_0] : memref<6x2xf32, #tpu.memory_space<vmem>>, vector<6x2xf32>
    %1 = vector.extract_strided_slice %0 {offsets = [0, 0], sizes = [6, 1], strides = [1, 1]} : vector<6x2xf32> to vector<6x1xf32>
    %2 = vector.extract_strided_slice %0 {offsets = [0, 1], sizes = [6, 1], strides = [1, 1]} : vector<6x2xf32> to vector<6x1xf32>
    %c0_1 = arith.constant 0 : index
    %c0_2 = arith.constant 0 : index
    %3 = vector.load %arg3[%c0_1, %c0_2] : memref<6x256xf32, #tpu.memory_space<vmem>>, vector<6x256xf32>
    %4 = vector.broadcast %1 : vector<6x1xf32> to vector<6x256xf32>
    %5 = arith.mulf %3, %4 : vector<6x256xf32>
    %6 = vector.broadcast %2 : vector<6x1xf32> to vector<6x256xf32>
    %7 = arith.addf %5, %6 : vector<6x256xf32>
    %c0_3 = arith.constant 0 : index
    %c0_4 = arith.constant 0 : index
    %8 = vector.load %arg4[%c0_3, %c0_4] : memref<6x256xf32, #tpu.memory_space<vmem>>, vector<6x256xf32>
    tpu.vector_store %arg4[%c0_3, %c0_4], %7 {strides = array<i32>} : memref<6x256xf32, #tpu.memory_space<vmem>>, vector<6x256xf32>,
    return
  }
  func.func @transform_0(%arg0: i32, %arg1: i32) -> (i32, i32) {
    %c0_i32 = arith.constant 0 : i32
    %c0_i32_0 = arith.constant 0 : i32
    return %arg0, %c0_i32 : i32, i32
  }
  func.func @transform_1(%arg0: i32, %arg1: i32) -> (i32, i32) {
    %c0_i32 = arith.constant 0 : i32
    return %arg0, %arg1 : i32, i32
  }
  func.func @transform_2(%arg0: i32, %arg1: i32) -> (i32, i32) {
    %c0_i32 = arith.constant 0 : i32
    return %arg0, %arg1 : i32, i32
  }
}

</mosaic_0001>

<llo_original>
// kernel: tpu_custom_call.1
$region0: #{tpu_custom_call.1}
  #allocation0 [shape = 'u32[]', space=smem, size = 0x4, offset = 0x4, fixed_abs, tag = 'smem constant byte address 0x4 - core index']
  #allocation1 [shape = 'u32[144,128]{1,0:T(1,128)}', space=vmem, size = 0x12000, scoped, tag = 'internal scratch']
  %s0 = inlined_call_operand.vmem [shape: f32[6,2], index: 0, kind: input, shape index: {}]
  %s1 = inlined_call_operand.hbm [shape: f32[6,256], index: 1, kind: input, shape index: {}]
  %s2 = inlined_call_operand.hbm [shape: f32[6,256], index: 2, kind: output, shape index: {}]
  %s3 = sld [smem:[#allocation0]]
  $region22: #{tpu_custom_call.1} parent=0
    _
  %s5 = ssub.s32 1, %s3
  %s6 = scalar_select 0, %s5, %s3
  $region1: #{tpu_custom_call.1} parent=0
    #allocation2 [shape = 'u8[8192]{0}', space=vmem, size = 0x2000, scoped, tag = 'input window, operand 1, single buffered']
    #allocation3 [shape = 's32[1]{0}', space=sflag, size = 0x4, scoped, tag = 'scoped memory for tpu_custom_call.1']
    #allocation4 [shape = 's32[1]{0}', space=sflag, size = 0x4, scoped, tag = 'scoped memory for tpu_custom_call.1']
    #allocation5 [shape = 'u8[8192]{0}', space=vmem, size = 0x2000, scoped, tag = 'output window, operand 0, single buffered']
    %7 = vsyncpa [#allocation3], 0
    %8 = vsyncpa [#allocation4], 0
    // Predicated region
    $region2: #{tpu_custom_call.1} parent=1 // pred_check
      _
    $region3: #{tpu_custom_call.1} parent=1 // pred_check_branch
      %10 = sbr.rel (0) target = $region5
    $region4: #{tpu_custom_call.1} parent=1 // pred_region
      _
    $region5: #{tpu_custom_call.1} parent=1 // pred_fallthru
      _
    // Predicated region
    $region6: #{tpu_custom_call.1} parent=1 // pred_check
      _
    $region7: #{tpu_custom_call.1} parent=1 // pred_check_branch
      %12 = sbr.rel (0) target = $region9
    $region8: #{tpu_custom_call.1} parent=1 // pred_region
      %s14 = ssub.s32 256, 256
      %15 = vsyncadd [#allocation3], %s14
      %s17 = sshll.u32 [#allocation2], 4
      %s18 = int_to_ptr.vmem [resolvable:$true] %s17
      %20 = dma.hbm_to_vmem [thread:$0]  %s1, 256, %s18, [#allocation3]
    $region9: #{tpu_custom_call.1} parent=1 // pred_fallthru
      _
    // Predicated region
    $region10: #{tpu_custom_call.1} parent=1 // pred_check
      _
    $region11: #{tpu_custom_call.1} parent=1 // pred_check_branch
      %22 = sbr.rel (0) target = $region13
    $region12: #{tpu_custom_call.1} parent=1 // pred_region
      %23 = dma.done [#allocation3], 256
    $region13: #{tpu_custom_call.1} parent=1 // pred_fallthru
      _
    %v24 = vld [vmem:[%s0] sm:$0x3f]
    %v25 = vld [vmem:[#allocation2] sm:$0x3f]
    %v26 = vld [vmem:[#allocation2 + $0x8] sm:$0x3f]
    %28 = vset.pattern.permute.xlu0 0
    %29 = vperm.xlu0 %28, %v24
    %v30 = vpop.permute.xlu0 %29
    %v32 = vmul.f32 %v25, %v30
    %v33 = vmul.f32 %v26, %v30
    %34 = vset.pattern.permute.xlu0 1
    %35 = vperm.xlu0 %34, %v24
    %v36 = vpop.permute.xlu0 %35
    %v38 = vadd.f32 %v32, %v36
    %v39 = vadd.f32 %v33, %v36
    %40 = vst [vmem:[#allocation5] sm:$0x3f] %v38
    %41 = vst [vmem:[#allocation5 + $0x8] sm:$0x3f] %v39
    // Predicated region
    $region14: #{tpu_custom_call.1} parent=1 // pred_check
      _
    $region15: #{tpu_custom_call.1} parent=1 // pred_check_branch
      %43 = sbr.rel (0) target = $region17
    $region16: #{tpu_custom_call.1} parent=1 // pred_region
      %s45 = ssub.s32 256, 256
      %46 = vsyncadd [#allocation4], %s45
      %s48 = sshll.u32 [#allocation5], 4
      %s49 = int_to_ptr.vmem [resolvable:$true] %s48
      %51 = dma.vmem_to_hbm [thread:$0]  %s49, 256, %s2, [#allocation4]
    $region17: #{tpu_custom_call.1} parent=1 // pred_fallthru
      _
    // Predicated region
    $region18: #{tpu_custom_call.1} parent=1 // pred_check
      _
    $region19: #{tpu_custom_call.1} parent=1 // pred_check_branch
      %53 = sbr.rel (0) target = $region21
    $region20: #{tpu_custom_call.1} parent=1 // pred_region
      %54 = dma.done [#allocation4], 256
    $region21: #{tpu_custom_call.1} parent=1 // pred_fallthru
      _
    %55 = vsyncpa [#allocation3], 1
    %56 = vsyncpa [#allocation4], 1

</llo_original>
